<compile_context>
chip_gen: v6e
topology: v6e:2x2x1
jax: 0.10.0
libtpu: 0.0.40
codegen_flags: <defaults>
</compile_context>

<pallas_src>
import functools

import jax
import jax.numpy as jnp
from jax.experimental import pallas as pl
from jax.experimental.pallas import tpu as pltpu

_MIB = 1024 * 1024


def _round_up(x, m):
    return (x + m - 1) // m * m


def _probe_pipeline_mode():
    try:
        pl.BlockSpec((8, 128), lambda i: (0, 0), pipeline_mode=pl.Buffered(1))
        return True
    except Exception:
        return False


_HAS_PIPELINE_MODE = _probe_pipeline_mode()


def _spec(shape, index_map, buffers=2):
    """BlockSpec; request non-default buffer depth when supported."""
    if buffers != 2 and _HAS_PIPELINE_MODE:
        return pl.BlockSpec(shape, index_map, pipeline_mode=pl.Buffered(buffers))
    return pl.BlockSpec(shape, index_map)


def _device_kind():
    try:
        return jax.devices()[0].device_kind.lower()
    except Exception:
        return ""


def _vmem_info():
    """Returns (physical VMEM bytes, usable budget = 3/4 of physical)."""
    phys = None
    try:
        phys = int(pltpu.get_tpu_info().vmem_capacity_bytes)
    except Exception:
        phys = None
    if not phys:
        # Fallback keyed on device_kind: only v7x is 64 MiB; v5e/v6e are 128.
        phys = 64 * _MIB if "v7" in _device_kind() else 128 * _MIB
    return phys, (phys * 3) // 4


def _num_tensorcores():
    kind = _device_kind()
    return 2 if any(k in kind for k in ("v7", "v5p", "v4")) else 1


def _pick_hw_tile(hw, c, itemsize, budget, small):
    """HW tile (multiple of 128) in the 512..2048-lane window; prefer one that
    divides hw exactly so the tiled path needs no host padding."""
    per_lane = 4 * _round_up(c, 8) * itemsize          # 2x in + 2x out per lane
    cap = max(budget - small, per_lane * 128) // per_lane
    cap = max(128, cap // 128 * 128)
    cap = max(512, min(cap, 2048))                     # target window (perf review)
    cap = min(cap, _round_up(hw, 128))
    cap = max(cap, 128)
    t = cap
    while t >= 512:                                    # exact divisor -> no pad
        if hw % t == 0:
            return t
        t -= 128
    return cap


# ------------------------------ kernels --------------------------------------


def _arm_fused_kernel(x_ref, w_ref, b_ref, o_ref, *, inv_hw, nb):
    # x_ref/o_ref: (nb, C, HW) input dtype; w_ref: (C, C) f32 (BN folded);
    # b_ref: (C, 1) f32.  HW block == full extent, so no padding is required.
    gap_cols = [
        jnp.sum(x_ref[i], axis=1, keepdims=True, dtype=jnp.float32) * inv_hw
        for i in range(nb)
    ]                                                            # nb x (C, 1)
    gap = gap_cols[0] if nb == 1 else jnp.concatenate(gap_cols, axis=1)  # (C, nb)
    # One (C,C) x (C,nb) MXU matmul for the whole batch of pooled vectors.
    pre = jnp.dot(w_ref[...], gap, preferred_element_type=jnp.float32)   # (C, nb)
    att = jax.nn.sigmoid(pre + b_ref[...])                               # (C, nb)
    for i in range(nb):
        a_i = att[:, i:i + 1].astype(o_ref.dtype)                        # (C, 1)
        o_ref[i] = x_ref[i] * a_i                        # broadcast over HW lanes


def _arm_pool_kernel(x_ref, psum_ref, acc_ref):
    # Pooled-sum reduction over HW tiles; grid = (N, splits, tiles_per_split).
    j = pl.program_id(2)

    @pl.when(j == 0)
    def _():
        acc_ref[...] = jnp.zeros_like(acc_ref)

    acc_ref[...] += jnp.sum(x_ref[0], axis=1, keepdims=True, dtype=jnp.float32)

    @pl.when(j == pl.num_programs(2) - 1)
    def _():
        psum_ref[0, 0] = acc_ref[...]


def _arm_mul_kernel(x_ref, att_ref, o_ref):
    # Broadcast multiply; att is already in the input dtype (no per-tile cast).
    o_ref[0] = x_ref[0] * att_ref[0]


# ------------------------------ wrapper --------------------------------------


def _fused_call(x3, w_folded, bias, nb, big_bufs, inv_hw, phys, vmem_need):
    n, c, hw = x3.shape
    vmem_limit = int(min(max(vmem_need, 32 * _MIB), phys))
    return pl.pallas_call(
        functools.partial(_arm_fused_kernel, inv_hw=inv_hw, nb=nb),
        out_shape=jax.ShapeDtypeStruct((n, c, hw), x3.dtype),
        grid_spec=pltpu.PrefetchScalarGridSpec(
            num_scalar_prefetch=0,
            grid=(n // nb,),
            in_specs=[
                _spec((nb, c, hw), lambda i: (i, 0, 0), buffers=big_bufs),
                _spec((c, c), lambda i: (0, 0), buffers=1),   # folded weight
                _spec((c, 1), lambda i: (0, 0), buffers=1),   # folded bias
            ],
            out_specs=_spec((nb, c, hw), lambda i: (i, 0, 0), buffers=big_bufs),
        ),
        compiler_params=pltpu.CompilerParams(
            dimension_semantics=("parallel",),
            vmem_limit_bytes=vmem_limit),
    )(x3, w_folded, bias)


def attention_refinement(x_nchw, conv_w, bn_gamma, bn_beta, bn_mean, bn_var,
                         eps=1e-5, *, force_tiled=False, hw_tile=None,
                         hw_splits=None):
    """BiSeNet AttentionRefinementModule forward (eval-mode BatchNorm)."""
    n, c, h, w = x_nchw.shape
    if conv_w.ndim == 4:
        conv_w = conv_w.reshape(conv_w.shape[0], conv_w.shape[1])
    c_out, c_in = conv_w.shape
    if c_in != c or c_out != c:
        raise ValueError(
            "AttentionRefinementModule broadcast-mul requires C_out == C_in == C "
            f"(got conv_w {conv_w.shape} for input C={c}).")

    hw = h * w
    inv_hw = 1.0 / float(hw)
    x3 = x_nchw.reshape(n, c, hw)
    itemsize = x3.dtype.itemsize

    # Fold eval-mode BN into the 1x1 conv: scale weight rows, keep a bias column.
    scale = bn_gamma.astype(jnp.float32) / jnp.sqrt(bn_var.astype(jnp.float32) + eps)
    w_folded = conv_w.astype(jnp.float32) * scale[:, None]                # (C, C)
    bias = (bn_beta.astype(jnp.float32)
            - bn_mean.astype(jnp.float32) * scale).reshape(c, 1)          # (C, 1)

    phys, budget = _vmem_info()
    ntc = _num_tensorcores()

    # Real VMEM footprints (sublane/lane padded).
    blk1 = _round_up(c, 8) * _round_up(hw, 128) * itemsize    # one image slab
    const_bufs = 1 if _HAS_PIPELINE_MODE else 2
    w_bytes = _round_up(c, 8) * _round_up(c, 128) * 4
    b_bytes = _round_up(c, 8) * 128 * 4
    small_fused = const_bufs * (w_bytes + b_bytes) + 2 * _MIB

    # Batch nb images per fused grid step (divisor of N; keep >= 2 steps on
    # multi-TC chips so the "parallel" grid axis can still use both cores).
    nb_cap = min(n, 16)
    if ntc > 1:
        nb_cap = min(nb_cap, max(1, n // ntc))
    nb = 1
    for cand in range(1, nb_cap + 1):
        if n % cand == 0 and 4 * cand * blk1 + small_fused <= budget:
            nb = cand
    n_steps = n // nb

    # Big-block buffer depth: single-buffer when there is only one grid step
    # (double-buffering buys nothing) or when double-buffered does not fit.
    if n_steps == 1 or 4 * nb * blk1 + small_fused > budget:
        big_bufs = 1
    else:
        big_bufs = 2
    if not _HAS_PIPELINE_MODE:
        big_bufs = 2
    fused_need = 2 * big_bufs * nb * blk1 + small_fused
    fused_fits = fused_need <= budget

    use_tiled = force_tiled or not fused_fits
    if (not use_tiled) and n == 1 and ntc > 1 and blk1 >= 8 * _MIB:
        # Batch-1 on a multi-TensorCore chip: split HW across both cores.
        use_tiled = True

    out3 = None
    if not use_tiled:
        if big_bufs == 1:
            try:
                out3 = _fused_call(x3, w_folded, bias, nb, 1, inv_hw, phys,
                                   2 * nb * blk1 + small_fused)
            except Exception:
                # Single-buffering rejected: retry double-buffered if it fits,
                # otherwise drop to the tiled path below.
                if 4 * nb * blk1 + small_fused <= budget:
                    out3 = _fused_call(x3, w_folded, bias, nb, 2, inv_hw, phys,
                                       4 * nb * blk1 + small_fused)
        else:
            out3 = _fused_call(x3, w_folded, bias, nb, 2, inv_hw, phys,
                               fused_need)

    if out3 is None:
        # ---- tiled fallback: pooled-sum reduction + broadcast-mul -----------
        col_f32 = _round_up(c, 8) * 128 * 4
        col_x = _round_up(c, 8) * 128 * itemsize
        if hw_tile is None:
            hw_tile = _pick_hw_tile(hw, c, itemsize, budget, 2 * col_x + 2 * _MIB)
        t = int(hw_tile)
        assert t % 128 == 0, "hw_tile must be a multiple of 128"
        s_splits = int(hw_splits) if hw_splits else (
            2 if (ntc > 1 and n == 1) else 1)
        hw_pad = _round_up(hw, s_splits * t)
        x_p = x3 if hw_pad == hw else jnp.pad(
            x3, ((0, 0), (0, 0), (0, hw_pad - hw)))   # zeros: no effect on sum
        n_tiles = hw_pad // t
        tps = n_tiles // s_splits
        blk_t = _round_up(c, 8) * t * itemsize

        pool_limit = int(min(max(2 * blk_t + 3 * col_f32 + 2 * _MIB, 32 * _MIB),
                             phys))
        psum = pl.pallas_call(
            _arm_pool_kernel,
            out_shape=jax.ShapeDtypeStruct((n, s_splits, c, 1), jnp.float32),
            grid_spec=pltpu.PrefetchScalarGridSpec(
                num_scalar_prefetch=0,
                grid=(n, s_splits, tps),
                in_specs=[pl.BlockSpec((1, c, t),
                                       lambda i, s, j: (i, 0, s * tps + j))],
                out_specs=pl.BlockSpec((1, 1, c, 1),
                                       lambda i, s, j: (i, s, 0, 0)),
                scratch_shapes=[pltpu.VMEM((c, 1), jnp.float32)],
            ),
            compiler_params=pltpu.CompilerParams(
                dimension_semantics=("parallel", "parallel", "arbitrary"),
                vmem_limit_bytes=pool_limit),
        )(x_p)

        # Tiny (N, C) epilogue: 1x1 conv (BN folded) + sigmoid on pooled means.
        gap = psum.sum(axis=1)[:, :, 0] * inv_hw                   # (N, C) f32
        att = jax.nn.sigmoid(gap @ w_folded.T + bias[:, 0][None, :])
        att = att.astype(x3.dtype).reshape(n, c, 1)                # input dtype

        mul_limit = int(min(max(4 * blk_t + 2 * col_x + 2 * _MIB, 32 * _MIB),
                            phys))
        out3 = pl.pallas_call(
            _arm_mul_kernel,
            out_shape=jax.ShapeDtypeStruct((n, c, hw_pad), x3.dtype),
            grid_spec=pltpu.PrefetchScalarGridSpec(
                num_scalar_prefetch=0,
                grid=(n, n_tiles),
                in_specs=[
                    pl.BlockSpec((1, c, t), lambda i, j: (i, 0, j)),
                    pl.BlockSpec((1, c, 1), lambda i, j: (i, 0, 0)),
                ],
                out_specs=pl.BlockSpec((1, c, t), lambda i, j: (i, 0, j)),
            ),
            compiler_params=pltpu.CompilerParams(
                dimension_semantics=("parallel", "parallel"),
                vmem_limit_bytes=mul_limit),
        )(x_p, att)
        if hw_pad != hw:
            out3 = out3[:, :, :hw]

    return out3.reshape(n, c, h, w)


def _reference(x_nchw, conv_w, bn_gamma, bn_beta, bn_mean, bn_var, eps=1e-5):
    gap = jnp.mean(x_nchw, axis=(2, 3))                           # (N, C)
    pre = gap @ conv_w.T                                          # (N, C)
    bn = (pre - bn_mean) / jnp.sqrt(bn_var + eps) * bn_gamma + bn_beta
    att = jax.nn.sigmoid(bn)[:, :, None, None]
    return x_nchw * att


if __name__ == "__main__":
    N, C, H, W = 2, 4, 16, 16  # in_channels == out_channels == 4

    key = jax.random.PRNGKey(0)
    kx, kw, kg, kb, km, kv = jax.random.split(key, 6)

    x = jax.random.normal(kx, (N, C, H, W), dtype=jnp.float32)
    # Conv2d(in, out, 1, bias=False) weight: (out, in, 1, 1) -> squeezed (out, in)
    conv_w = jax.random.normal(kw, (C, C), dtype=jnp.float32) * 0.5
    bn_gamma = 1.0 + 0.1 * jax.random.normal(kg, (C,), dtype=jnp.float32)
    bn_beta = 0.1 * jax.random.normal(kb, (C,), dtype=jnp.float32)
    bn_mean = 0.05 * jax.random.normal(km, (C,), dtype=jnp.float32)
    bn_var = 1.0 + 0.1 * jax.random.uniform(kv, (C,), dtype=jnp.float32)

    ref = _reference(x, conv_w, bn_gamma, bn_beta, bn_mean, bn_var)

    # 1) Fused path (auto): no host padding, full-extent HW block, batched nb.
    out = jax.block_until_ready(
        attention_refinement(x, conv_w, bn_gamma, bn_beta, bn_mean, bn_var))
    assert out.shape == (N, C, H, W)
    assert jnp.allclose(out, ref, atol=1e-5, rtol=1e-5), "fused path mismatch"

    # 2) Tiled path (forced): pooled-sum reduction + parallel broadcast-mul.
    out_t = jax.block_until_ready(
        attention_refinement(x, conv_w, bn_gamma, bn_beta, bn_mean, bn_var,
                             force_tiled=True))
    assert jnp.allclose(out_t, ref, atol=1e-5, rtol=1e-5), "tiled path mismatch"

    # 3) Tiled path with a 2-way HW split (exercises the multi-TensorCore
    #    batch-1 layout and the pad-to-tile-multiple path).
    out_s = jax.block_until_ready(
        attention_refinement(x, conv_w, bn_gamma, bn_beta, bn_mean, bn_var,
                             force_tiled=True, hw_splits=2))
    assert jnp.allclose(out_s, ref, atol=1e-5, rtol=1e-5), "split tiled mismatch"

    # 4) Non-128-multiple spatial size: fused path, no host pad or slice.
    x2 = jax.random.normal(kx, (N, C, 10, 12), dtype=jnp.float32)
    ref2 = _reference(x2, conv_w, bn_gamma, bn_beta, bn_mean, bn_var)
    out2 = jax.block_until_ready(
        attention_refinement(x2, conv_w, bn_gamma, bn_beta, bn_mean, bn_var))
    assert out2.shape == (N, C, 10, 12)
    assert jnp.allclose(out2, ref2, atol=1e-5, rtol=1e-5), "odd-HW path mismatch"

    print("KERNEL_OK")
</pallas_src>

<mosaic_0001>
module attributes {stable_mosaic.version = 11 : i64} {
  func.func @_arm_fused_kernel(%arg0: i32, %arg1: memref<2x4x256xf32, #tpu.memory_space<vmem>>, %arg2: memref<4x4xf32, #tpu.memory_space<vmem>>, %arg3: memref<4x1xf32, #tpu.memory_space<vmem>>, %arg4: memref<2x4x256xf32, #tpu.memory_space<vmem>>) attributes {dimension_semantics = [#tpu.dimension_semantics<parallel>], iteration_bounds = array<i64: 1>, scalar_prefetch = 0 : i64, scratch_operands = 0 : i64, tpu.core_type = #tpu.core_type<tc>, window_params = [{pipeline_mode = #tpu.pipeline_mode<synchronous>, transform_indices = @transform_0, window_bounds = array<i64: 2, 4, 256>}, {pipeline_mode = #tpu.pipeline_mode<synchronous>, transform_indices = @transform_1, window_bounds = array<i64: 4, 4>}, {pipeline_mode = #tpu.pipeline_mode<synchronous>, transform_indices = @transform_2, window_bounds = array<i64: 4, 1>}, {pipeline_mode = #tpu.pipeline_mode<synchronous>, transform_indices = @transform_3, window_bounds = array<i64: 2, 4, 256>}]} {
    %c0 = arith.constant 0 : index
    %c0_0 = arith.constant 0 : index
    %c0_1 = arith.constant 0 : index
    %0 = vector.load %arg1[%c0, %c0_0, %c0_1] : memref<2x4x256xf32, #tpu.memory_space<vmem>>, vector<1x4x256xf32>
    %1 = vector.shape_cast %0 : vector<1x4x256xf32> to vector<4x256xf32>
    %cst = arith.constant dense<0.000000e+00> : vector<4xf32>
    %2 = vector.multi_reduction <add>, %1, %cst [1] : vector<4x256xf32> to vector<4xf32>
    %3 = vector.shape_cast %2 : vector<4xf32> to vector<4x1xf32>
    %cst_2 = arith.constant 3.906250e-03 : f32
    %4 = vector.broadcast %cst_2 : f32 to vector<4x1xf32>
    %5 = arith.mulf %3, %4 : vector<4x1xf32>
    %c1 = arith.constant 1 : index
    %c0_3 = arith.constant 0 : index
    %c0_4 = arith.constant 0 : index
    %6 = vector.load %arg1[%c1, %c0_3, %c0_4] : memref<2x4x256xf32, #tpu.memory_space<vmem>>, vector<1x4x256xf32>
    %7 = vector.shape_cast %6 : vector<1x4x256xf32> to vector<4x256xf32>
    %cst_5 = arith.constant dense<0.000000e+00> : vector<4xf32>
    %8 = vector.multi_reduction <add>, %7, %cst_5 [1] : vector<4x256xf32> to vector<4xf32>
    %9 = vector.shape_cast %8 : vector<4xf32> to vector<4x1xf32>
    %cst_6 = arith.constant 3.906250e-03 : f32
    %10 = vector.broadcast %cst_6 : f32 to vector<4x1xf32>
    %11 = arith.mulf %9, %10 : vector<4x1xf32>
    %12 = tpu.concatenate %5, %11 in 1 : vector<4x1xf32>, vector<4x1xf32> -> vector<4x2xf32>
    %c0_7 = arith.constant 0 : index
    %c0_8 = arith.constant 0 : index
    %13 = vector.load %arg2[%c0_7, %c0_8] : memref<4x4xf32, #tpu.memory_space<vmem>>, vector<4x4xf32>
    %cst_9 = arith.constant dense<0.000000e+00> : vector<4x2xf32>
    %14 = tpu.matmul %13, %12, %cst_9 {dimension_numbers = #tpu.dot_dimension_numbers<[1], [0], [0], [1], [0, 0, 1, 1], [], []>} : vector<4x4xf32>, vector<4x2xf32>, vector<4x2xf32> -> vector<4x2xf32>
    %c0_10 = arith.constant 0 : index
    %c0_11 = arith.constant 0 : index
    %15 = vector.load %arg3[%c0_10, %c0_11] : memref<4x1xf32, #tpu.memory_space<vmem>>, vector<4x1xf32>
    %16 = vector.broadcast %15 : vector<4x1xf32> to vector<4x2xf32>
    %17 = arith.addf %14, %16 : vector<4x2xf32>
    %18 = arith.negf %17 : vector<4x2xf32>
    %19 = math.exp %18 : vector<4x2xf32>
    %cst_12 = arith.constant 1.000000e+00 : f32
    %20 = vector.broadcast %cst_12 : f32 to vector<4x2xf32>
    %21 = arith.addf %20, %19 : vector<4x2xf32>
    %22 = arith.divf %20, %21 : vector<4x2xf32>
    %23 = vector.extract_strided_slice %22 {offsets = [0, 0], sizes = [4, 1], strides = [1, 1]} : vector<4x2xf32> to vector<4x1xf32>
    %c0_13 = arith.constant 0 : index
    %c0_14 = arith.constant 0 : index
    %c0_15 = arith.constant 0 : index
    %24 = vector.load %arg1[%c0_13, %c0_14, %c0_15] : memref<2x4x256xf32, #tpu.memory_space<vmem>>, vector<1x4x256xf32>
    %25 = vector.shape_cast %24 : vector<1x4x256xf32> to vector<4x256xf32>
    %26 = vector.broadcast %23 : vector<4x1xf32> to vector<4x256xf32>
    %27 = arith.mulf %25, %26 : vector<4x256xf32>
    %c0_16 = arith.constant 0 : index
    %c0_17 = arith.constant 0 : index
    %c0_18 = arith.constant 0 : index
    %28 = vector.load %arg4[%c0_16, %c0_17, %c0_18] : memref<2x4x256xf32, #tpu.memory_space<vmem>>, vector<1x4x256xf32>
    %29 = vector.shape_cast %28 : vector<1x4x256xf32> to vector<4x256xf32>
    %30 = vector.shape_cast %27 : vector<4x256xf32> to vector<1x4x256xf32>
    tpu.vector_store %arg4[%c0_16, %c0_17, %c0_18], %30 {strides = array<i32>} : memref<2x4x256xf32, #tpu.memory_space<vmem>>, vector<1x4x256xf32>,
    %31 = vector.extract_strided_slice %22 {offsets = [0, 1], sizes = [4, 1], strides = [1, 1]} : vector<4x2xf32> to vector<4x1xf32>
    %c1_19 = arith.constant 1 : index
    %c0_20 = arith.constant 0 : index
    %c0_21 = arith.constant 0 : index
    %32 = vector.load %arg1[%c1_19, %c0_20, %c0_21] : memref<2x4x256xf32, #tpu.memory_space<vmem>>, vector<1x4x256xf32>
    %33 = vector.shape_cast %32 : vector<1x4x256xf32> to vector<4x256xf32>
    %34 = vector.broadcast %31 : vector<4x1xf32> to vector<4x256xf32>
    %35 = arith.mulf %33, %34 : vector<4x256xf32>
    %c1_22 = arith.constant 1 : index
    %c0_23 = arith.constant 0 : index
    %c0_24 = arith.constant 0 : index
    %36 = vector.load %arg4[%c1_22, %c0_23, %c0_24] : memref<2x4x256xf32, #tpu.memory_space<vmem>>, vector<1x4x256xf32>
    %37 = vector.shape_cast %36 : vector<1x4x256xf32> to vector<4x256xf32>
    %38 = vector.shape_cast %35 : vector<4x256xf32> to vector<1x4x256xf32>
    tpu.vector_store %arg4[%c1_22, %c0_23, %c0_24], %38 {strides = array<i32>} : memref<2x4x256xf32, #tpu.memory_space<vmem>>, vector<1x4x256xf32>,
    return
  }
  func.func @transform_0(%arg0: i32) -> (i32, i32, i32) {
    %c0_i32 = arith.constant 0 : i32
    %c0_i32_0 = arith.constant 0 : i32
    %c0_i32_1 = arith.constant 0 : i32
    return %arg0, %c0_i32, %c0_i32_0 : i32, i32, i32
  }
  func.func @transform_1(%arg0: i32) -> (i32, i32) {
    %c0_i32 = arith.constant 0 : i32
    %c0_i32_0 = arith.constant 0 : i32
    %c0_i32_1 = arith.constant 0 : i32
    return %c0_i32, %c0_i32_0 : i32, i32
  }
  func.func @transform_2(%arg0: i32) -> (i32, i32) {
    %c0_i32 = arith.constant 0 : i32
    %c0_i32_0 = arith.constant 0 : i32
    %c0_i32_1 = arith.constant 0 : i32
    return %c0_i32, %c0_i32_0 : i32, i32
  }
  func.func @transform_3(%arg0: i32) -> (i32, i32, i32) {
    %c0_i32 = arith.constant 0 : i32
    %c0_i32_0 = arith.constant 0 : i32
    %c0_i32_1 = arith.constant 0 : i32
    return %arg0, %c0_i32, %c0_i32_0 : i32, i32, i32
  }
}

module attributes {stable_mosaic.version = 11 : i64} {
  func.func @_arm_fused_kernel(%arg0: i32, %arg1: memref<2x4x256xf32, #tpu.memory_space<vmem>>, %arg2: memref<4x4xf32, #tpu.memory_space<vmem>>, %arg3: memref<4x1xf32, #tpu.memory_space<vmem>>, %arg4: memref<2x4x256xf32, #tpu.memory_space<vmem>>) attributes {dimension_semantics = [#tpu.dimension_semantics<parallel>], iteration_bounds = array<i64: 1>, scalar_prefetch = 0 : i64, scratch_operands = 0 : i64, tpu.core_type = #tpu.core_type<tc>, window_params = [{transform_indices = @transform_0, window_bounds = array<i64: 2, 4, 256>}, {pipeline_mode = #tpu.pipeline_mode<synchronous>, transform_indices = @transform_1, window_bounds = array<i64: 4, 4>}, {pipeline_mode = #tpu.pipeline_mode<synchronous>, transform_indices = @transform_2, window_bounds = array<i64: 4, 1>}, {transform_indices = @transform_3, window_bounds = array<i64: 2, 4, 256>}]} {
    %c0 = arith.constant 0 : index
    %c0_0 = arith.constant 0 : index
    %c0_1 = arith.constant 0 : index
    %0 = vector.load %arg1[%c0, %c0_0, %c0_1] : memref<2x4x256xf32, #tpu.memory_space<vmem>>, vector<1x4x256xf32>
    %1 = vector.shape_cast %0 : vector<1x4x256xf32> to vector<4x256xf32>
    %cst = arith.constant dense<0.000000e+00> : vector<4xf32>
    %2 = vector.multi_reduction <add>, %1, %cst [1] : vector<4x256xf32> to vector<4xf32>
    %3 = vector.shape_cast %2 : vector<4xf32> to vector<4x1xf32>
    %cst_2 = arith.constant 3.906250e-03 : f32
    %4 = vector.broadcast %cst_2 : f32 to vector<4x1xf32>
    %5 = arith.mulf %3, %4 : vector<4x1xf32>
    %c1 = arith.constant 1 : index
    %c0_3 = arith.constant 0 : index
    %c0_4 = arith.constant 0 : index
    %6 = vector.load %arg1[%c1, %c0_3, %c0_4] : memref<2x4x256xf32, #tpu.memory_space<vmem>>, vector<1x4x256xf32>
    %7 = vector.shape_cast %6 : vector<1x4x256xf32> to vector<4x256xf32>
    %cst_5 = arith.constant dense<0.000000e+00> : vector<4xf32>
    %8 = vector.multi_reduction <add>, %7, %cst_5 [1] : vector<4x256xf32> to vector<4xf32>
    %9 = vector.shape_cast %8 : vector<4xf32> to vector<4x1xf32>
    %cst_6 = arith.constant 3.906250e-03 : f32
    %10 = vector.broadcast %cst_6 : f32 to vector<4x1xf32>
    %11 = arith.mulf %9, %10 : vector<4x1xf32>
    %12 = tpu.concatenate %5, %11 in 1 : vector<4x1xf32>, vector<4x1xf32> -> vector<4x2xf32>
    %c0_7 = arith.constant 0 : index
    %c0_8 = arith.constant 0 : index
    %13 = vector.load %arg2[%c0_7, %c0_8] : memref<4x4xf32, #tpu.memory_space<vmem>>, vector<4x4xf32>
    %cst_9 = arith.constant dense<0.000000e+00> : vector<4x2xf32>
    %14 = tpu.matmul %13, %12, %cst_9 {dimension_numbers = #tpu.dot_dimension_numbers<[1], [0], [0], [1], [0, 0, 1, 1], [], []>} : vector<4x4xf32>, vector<4x2xf32>, vector<4x2xf32> -> vector<4x2xf32>
    %c0_10 = arith.constant 0 : index
    %c0_11 = arith.constant 0 : index
    %15 = vector.load %arg3[%c0_10, %c0_11] : memref<4x1xf32, #tpu.memory_space<vmem>>, vector<4x1xf32>
    %16 = vector.broadcast %15 : vector<4x1xf32> to vector<4x2xf32>
    %17 = arith.addf %14, %16 : vector<4x2xf32>
    %18 = arith.negf %17 : vector<4x2xf32>
    %19 = math.exp %18 : vector<4x2xf32>
    %cst_12 = arith.constant 1.000000e+00 : f32
    %20 = vector.broadcast %cst_12 : f32 to vector<4x2xf32>
    %21 = arith.addf %20, %19 : vector<4x2xf32>
    %22 = arith.divf %20, %21 : vector<4x2xf32>
    %23 = vector.extract_strided_slice %22 {offsets = [0, 0], sizes = [4, 1], strides = [1, 1]} : vector<4x2xf32> to vector<4x1xf32>
    %c0_13 = arith.constant 0 : index
    %c0_14 = arith.constant 0 : index
    %c0_15 = arith.constant 0 : index
    %24 = vector.load %arg1[%c0_13, %c0_14, %c0_15] : memref<2x4x256xf32, #tpu.memory_space<vmem>>, vector<1x4x256xf32>
    %25 = vector.shape_cast %24 : vector<1x4x256xf32> to vector<4x256xf32>
    %26 = vector.broadcast %23 : vector<4x1xf32> to vector<4x256xf32>
    %27 = arith.mulf %25, %26 : vector<4x256xf32>
    %c0_16 = arith.constant 0 : index
    %c0_17 = arith.constant 0 : index
    %c0_18 = arith.constant 0 : index
    %28 = vector.load %arg4[%c0_16, %c0_17, %c0_18] : memref<2x4x256xf32, #tpu.memory_space<vmem>>, vector<1x4x256xf32>
    %29 = vector.shape_cast %28 : vector<1x4x256xf32> to vector<4x256xf32>
    %30 = vector.shape_cast %27 : vector<4x256xf32> to vector<1x4x256xf32>
    tpu.vector_store %arg4[%c0_16, %c0_17, %c0_18], %30 {strides = array<i32>} : memref<2x4x256xf32, #tpu.memory_space<vmem>>, vector<1x4x256xf32>,
    %31 = vector.extract_strided_slice %22 {offsets = [0, 1], sizes = [4, 1], strides = [1, 1]} : vector<4x2xf32> to vector<4x1xf32>
    %c1_19 = arith.constant 1 : index
    %c0_20 = arith.constant 0 : index
    %c0_21 = arith.constant 0 : index
    %32 = vector.load %arg1[%c1_19, %c0_20, %c0_21] : memref<2x4x256xf32, #tpu.memory_space<vmem>>, vector<1x4x256xf32>
    %33 = vector.shape_cast %32 : vector<1x4x256xf32> to vector<4x256xf32>
    %34 = vector.broadcast %31 : vector<4x1xf32> to vector<4x256xf32>
    %35 = arith.mulf %33, %34 : vector<4x256xf32>
    %c1_22 = arith.constant 1 : index
    %c0_23 = arith.constant 0 : index
    %c0_24 = arith.constant 0 : index
    %36 = vector.load %arg4[%c1_22, %c0_23, %c0_24] : memref<2x4x256xf32, #tpu.memory_space<vmem>>, vector<1x4x256xf32>
    %37 = vector.shape_cast %36 : vector<1x4x256xf32> to vector<4x256xf32>
    %38 = vector.shape_cast %35 : vector<4x256xf32> to vector<1x4x256xf32>
    tpu.vector_store %arg4[%c1_22, %c0_23, %c0_24], %38 {strides = array<i32>} : memref<2x4x256xf32, #tpu.memory_space<vmem>>, vector<1x4x256xf32>,
    return
  }
  func.func @transform_0(%arg0: i32) -> (i32, i32, i32) {
    %c0_i32 = arith.constant 0 : i32
    %c0_i32_0 = arith.constant 0 : i32
    %c0_i32_1 = arith.constant 0 : i32
    return %arg0, %c0_i32, %c0_i32_0 : i32, i32, i32
  }
  func.func @transform_1(%arg0: i32) -> (i32, i32) {
    %c0_i32 = arith.constant 0 : i32
    %c0_i32_0 = arith.constant 0 : i32
    %c0_i32_1 = arith.constant 0 : i32
    return %c0_i32, %c0_i32_0 : i32, i32
  }
  func.func @transform_2(%arg0: i32) -> (i32, i32) {
    %c0_i32 = arith.constant 0 : i32
    %c0_i32_0 = arith.constant 0 : i32
    %c0_i32_1 = arith.constant 0 : i32
    return %c0_i32, %c0_i32_0 : i32, i32
  }
  func.func @transform_3(%arg0: i32) -> (i32, i32, i32) {
    %c0_i32 = arith.constant 0 : i32
    %c0_i32_0 = arith.constant 0 : i32
    %c0_i32_1 = arith.constant 0 : i32
    return %arg0, %c0_i32, %c0_i32_0 : i32, i32, i32
  }
}

</mosaic_0001>

<llo_original>
// kernel: tpu_custom_call.1
$region0: #{tpu_custom_call.1}
  #allocation0 [shape = 'u32[]', space=smem, size = 0x4, offset = 0x4, fixed_abs, tag = 'smem constant byte address 0x4 - core index']
  #allocation1 [shape = 'u32[144,128]{1,0:T(1,128)}', space=vmem, size = 0x12000, scoped, tag = 'internal scratch']
  %s0 = inlined_call_operand.hbm [shape: f32[2,4,256], index: 0, kind: input, shape index: {}]
  %s1 = inlined_call_operand.vmem [shape: f32[4,4], index: 1, kind: input, shape index: {}]
  %s2 = inlined_call_operand.vmem [shape: f32[4,1], index: 2, kind: input, shape index: {}]
  %s3 = inlined_call_operand.hbm [shape: f32[2,4,256], index: 3, kind: output, shape index: {}]
  %s4 = sld [smem:[#allocation0]]
  $region26: #{tpu_custom_call.1} parent=0
    _
  %s6 = ssub.s32 1, %s4
  %s7 = scalar_select 0, %s6, %s4
  $region1: #{tpu_custom_call.1} parent=0
    #allocation2 [shape = 'u8[8192]{0}', space=vmem, size = 0x2000, scoped, tag = 'input window, operand 0, single buffered']
    #allocation3 [shape = 's32[1]{0}', space=sflag, size = 0x4, scoped, tag = 'scoped memory for tpu_custom_call.1']
    #allocation4 [shape = 's32[1]{0}', space=sflag, size = 0x4, scoped, tag = 'scoped memory for tpu_custom_call.1']
    #allocation5 [shape = 'u8[8192]{0}', space=vmem, size = 0x2000, scoped, tag = 'output window, operand 0, single buffered']
    %8 = vsyncpa [#allocation3], 0
    %9 = vsyncpa [#allocation4], 0
    // Predicated region
    $region2: #{tpu_custom_call.1} parent=1 // pred_check
      _
    $region3: #{tpu_custom_call.1} parent=1 // pred_check_branch
      %11 = sbr.rel (0) target = $region5
    $region4: #{tpu_custom_call.1} parent=1 // pred_region
      %s13 = ssub.s32 256, 256
      %14 = vsyncadd [#allocation3], %s13
      %s15 = sshll.u32 [#allocation2], 4
      %s16 = int_to_ptr.vmem [resolvable:$true] %s15
      %21 = dma.hbm_to_vmem [thread:$0]  %s0, 256, %s16, [#allocation3], 128, 128, 8
    $region5: #{tpu_custom_call.1} parent=1 // pred_fallthru
      _
    // Predicated region
    $region6: #{tpu_custom_call.1} parent=1 // pred_check
      _
    $region7: #{tpu_custom_call.1} parent=1 // pred_check_branch
      %23 = sbr.rel (0) target = $region9
    $region8: #{tpu_custom_call.1} parent=1 // pred_region
      _
    $region9: #{tpu_custom_call.1} parent=1 // pred_fallthru
      _
    // Predicated region
    $region10: #{tpu_custom_call.1} parent=1 // pred_check
      _
    $region11: #{tpu_custom_call.1} parent=1 // pred_check_branch
      %25 = sbr.rel (0) target = $region13
    $region12: #{tpu_custom_call.1} parent=1 // pred_region
      _
    $region13: #{tpu_custom_call.1} parent=1 // pred_fallthru
      _
    // Predicated region
    $region14: #{tpu_custom_call.1} parent=1 // pred_check
      _
    $region15: #{tpu_custom_call.1} parent=1 // pred_check_branch
      %27 = sbr.rel (0) target = $region17
    $region16: #{tpu_custom_call.1} parent=1 // pred_region
      %28 = dma.done [#allocation3], 256
    $region17: #{tpu_custom_call.1} parent=1 // pred_fallthru
      _
    %v29 = vld [vmem:[#allocation2] sm:$0xff]
    %v31 = vcombine.high %v29, %v29
    %vm33 = vcmask 1043456
    %v34 = vsel %vm33, %v29, 0.0
    %v35 = vsel %vm33, %v31, 0.0
    %v36 = vadd.f32 %v34, %v35
    %37 = vadd.xlane.f32.xlu0 %v36
    %v38 = vpop.xlane.xlu0 %37
    %v39 = vmul.f32 %v38, 0.00390625
    %s40 = scalar_lea.vmem [#allocation2], 8
    %v41 = vld [vmem:[%s40] sm:$0xff]
    %v43 = vcombine.high %v41, %v41
    %v45 = vsel %vm33, %v41, 0.0
    %v46 = vsel %vm33, %v43, 0.0
    %v47 = vadd.f32 %v45, %v46
    %48 = vadd.xlane.f32.xlu0 %v47
    %v49 = vpop.xlane.xlu0 %48
    %v50 = vmul.f32 %v49, 0.00390625
    %vm51 = vcmask 7168
    %v52 = vsel %vm51, %v39, %v50
    %v53 = vld [vmem:[%s1] sm:$0xf]
    %v54 = vld [vmem:[%s2] sm:$0xf]
    %56 = vset.pattern.permute.xlu0 0
    %57 = vperm.xlu0 %56, %v54
    %v58 = vpop.permute.xlu0 %57
    %vm60 = vcmask 31744
    %v62 = vsel %vm60, %v53, 0
    %v65 = vsel %vm33, %v52, 0
    %67 = vmatprep.subr.mxu0 0.0
    %68 = vmatpush1.msra.mxu0 0.0
    %69 = vmatprep.subr.mxu0 0.0
    %70 = vmatpush1.msra.mxu0 0.0
    %71 = vmatprep.subr.mxu0 0.0
    %72 = vmatpush1.msra.mxu0 0.0
    %73 = vmatprep.subr.mxu0 0.0
    %74 = vmatpush1.msra.mxu0 0.0
    %75 = vmatprep.subr.mxu0 0.0
    %76 = vmatpush1.msra.mxu0 0.0
    %77 = vmatprep.subr.mxu0 0.0
    %78 = vmatpush1.msra.mxu0 0.0
    %79 = vmatprep.subr.mxu0 0.0
    %80 = vmatpush1.msra.mxu0 0.0
    %81 = vmatprep.subr.mxu0 0.0
    %82 = vmatpush1.msra.mxu0 0.0
    %83 = vmatprep.subr.mxu0 0.0
    %84 = vmatpush1.msra.mxu0 0.0
    %85 = vmatprep.subr.mxu0 0.0
    %86 = vmatpush1.msra.mxu0 0.0
    %87 = vmatprep.subr.mxu0 0.0
    %88 = vmatpush1.msra.mxu0 0.0
    %89 = vmatprep.subr.mxu0 0.0
    %90 = vmatpush1.msra.mxu0 0.0
    %91 = vmatprep.subr.mxu0 0.0
    %92 = vmatpush1.msra.mxu0 0.0
    %93 = vmatprep.subr.mxu0 0.0
    %94 = vmatpush1.msra.mxu0 0.0
    %95 = vmatprep.subr.mxu0 0.0
    %96 = vmatpush1.msra.mxu0 0.0
    %97 = vmatprep.subr.mxu0 0.0
    %98 = vmatpush1.msra.mxu0 %v65
    %99 = vmatprep.subr.mxu0 0.0
    %100 = vmatpush2.msra.mxu0 0.0
    %101 = vmatprep.subr.mxu0 0.0
    %102 = vmatpush2.msra.mxu0 0.0
    %103 = vmatprep.subr.mxu0 0.0
    %104 = vmatpush2.msra.mxu0 0.0
    %105 = vmatprep.subr.mxu0 0.0
    %106 = vmatpush2.msra.mxu0 0.0
    %107 = vmatprep.subr.mxu0 0.0
    %108 = vmatpush2.msra.mxu0 0.0
    %109 = vmatprep.subr.mxu0 0.0
    %110 = vmatpush2.msra.mxu0 0.0
    %111 = vmatprep.subr.mxu0 0.0
    %112 = vmatpush2.msra.mxu0 0.0
    %113 = vmatprep.subr.mxu0 0.0
    %114 = vmatpush2.msra.mxu0 0.0
    %115 = vmatprep.subr.mxu0 0.0
    %116 = vmatpush2.msra.mxu0 0.0
    %117 = vmatprep.subr.mxu0 0.0
    %118 = vmatpush2.msra.mxu0 0.0
    %119 = vmatprep.subr.mxu0 0.0
    %120 = vmatpush2.msra.mxu0 0.0
    %121 = vmatprep.subr.mxu0 0.0
    %122 = vmatpush2.msra.mxu0 0.0
    %123 = vmatprep.subr.mxu0 0.0
    %124 = vmatpush2.msra.mxu0 0.0
    %125 = vmatprep.subr.mxu0 0.0
    %126 = vmatpush2.msra.mxu0 0.0
    %127 = vmatprep.subr.mxu0 0.0
    %128 = vmatpush2.msra.mxu0 0.0
    %129 = vmatprep.subr.mxu0 0.0
    %130 = vmatpush2.msra.mxu0 0.0
    %131 = vmatprep.mubr.f32.mxu0 0.0
    %132 = vmatmul.mubr.f32.gmra.mxu0 %v62
    %v133 = vpop.f32.mrf.mxu0
    %v134 = vadd.f32 %v58, %v133
    %v135 = vpop.f32.mrf.mxu0
    %136 = vdwg.mxu0
    %v137 = vxor.u32 %v134, 2147483648
    %v138 = vmul.f32 %v137, 1.442695
    %v139 = vpow.pop %v138
    %v140 = vadd.f32 %v139, 1.0
    %v141 = vrcp.pop %v140
    %v142 = vmul.f32 1.0, %v141
    %144 = vset.pattern.permute.xlu0 0
    %145 = vperm.xlu0 %144, %v142
    %v146 = vpop.permute.xlu0 %145
    %v148 = vunpack.c.l.s4 839922192
    %v149 = vunpack.c.0.s8 %v148
    %v150 = vlaneseq
    %v151 = vshrl.u32 %v150, 7
    %v152 = vsub.s32 %v149, %v151
    %v153 = vrot.slane %v146, %v152
    %v155 = vmul.f32 %v29, %v153
    %156 = vst [vmem:[#allocation5] sm:$0xff] %v155
    %v157 = vld [vmem:[%s40] sm:$0xff]
    %158 = vset.pattern.permute.xlu0 1
    %159 = vperm.xlu0 %158, %v142
    %v160 = vpop.permute.xlu0 %159
    %v162 = vunpack.c.l.s4 839922192
    %v163 = vunpack.c.0.s8 %v162
    %v164 = vlaneseq
    %v165 = vshrl.u32 %v164, 7
    %v166 = vsub.s32 %v163, %v165
    %v167 = vrot.slane %v160, %v166
    %v169 = vmul.f32 %v157, %v167
    %s170 = scalar_lea.vmem [#allocation5], 8
    %171 = vst [vmem:[%s170] sm:$0xff] %v169
    // Predicated region
    $region18: #{tpu_custom_call.1} parent=1 // pred_check
      _
    $region19: #{tpu_custom_call.1} parent=1 // pred_check_branch
      %173 = sbr.rel (0) target = $region21
    $region20: #{tpu_custom_call.1} parent=1 // pred_region
      %s175 = ssub.s32 256, 256
      %176 = vsyncadd [#allocation4], %s175
      %s177 = sshll.u32 [#allocation5], 4
      %s178 = int_to_ptr.vmem [resolvable:$true] %s177
      %183 = dma.vmem_to_hbm [thread:$0]  %s178, 256, %s3, [#allocation4], 128, 128, 8
    $region21: #{tpu_custom_call.1} parent=1 // pred_fallthru
      _
    // Predicated region
    $region22: #{tpu_custom_call.1} parent=1 // pred_check
      _
    $region23: #{tpu_custom_call.1} parent=1 // pred_check_branch
      %185 = sbr.rel (0) target = $region25
    $region24: #{tpu_custom_call.1} parent=1 // pred_region
      %186 = dma.done [#allocation4], 256
    $region25: #{tpu_custom_call.1} parent=1 // pred_fallthru
      _
    %187 = vsyncpa [#allocation3], 1
    %188 = vsyncpa [#allocation4], 1

// kernel: tpu_custom_call.1
$region0: #{tpu_custom_call.1}
  #allocation0 [shape = 'u32[]', space=smem, size = 0x4, offset = 0x4, fixed_abs, tag = 'smem constant byte address 0x4 - core index']
  #allocation1 [shape = 'u32[144,128]{1,0:T(1,128)}', space=vmem, size = 0x12000, scoped, tag = 'internal scratch']
  %s0 = inlined_call_operand.hbm [shape: f32[2,4,256], index: 0, kind: input, shape index: {}]
  %s1 = inlined_call_operand.vmem [shape: f32[4,4], index: 1, kind: input, shape index: {}]
  %s2 = inlined_call_operand.vmem [shape: f32[4,1], index: 2, kind: input, shape index: {}]
  %s3 = inlined_call_operand.hbm [shape: f32[2,4,256], index: 3, kind: output, shape index: {}]
  %s4 = sld [smem:[#allocation0]]
  $region26: #{tpu_custom_call.1} parent=0
    _
  %s6 = ssub.s32 1, %s4
  %s7 = scalar_select 0, %s6, %s4
  $region1: #{tpu_custom_call.1} parent=0
    #allocation2 [shape = 'u8[8192]{0}', space=vmem, size = 0x2000, scoped, tag = 'input window, operand 0, single buffered']
    #allocation3 [shape = 's32[1]{0}', space=sflag, size = 0x4, scoped, tag = 'scoped memory for tpu_custom_call.1']
    #allocation4 [shape = 's32[1]{0}', space=sflag, size = 0x4, scoped, tag = 'scoped memory for tpu_custom_call.1']
    #allocation5 [shape = 'u8[8192]{0}', space=vmem, size = 0x2000, scoped, tag = 'output window, operand 0, single buffered']
    %8 = vsyncpa [#allocation3], 0
    %9 = vsyncpa [#allocation4], 0
    // Predicated region
    $region2: #{tpu_custom_call.1} parent=1 // pred_check
      _
    $region3: #{tpu_custom_call.1} parent=1 // pred_check_branch
      %11 = sbr.rel (0) target = $region5
    $region4: #{tpu_custom_call.1} parent=1 // pred_region
      %s13 = ssub.s32 256, 256
      %14 = vsyncadd [#allocation3], %s13
      %s15 = sshll.u32 [#allocation2], 4
      %s16 = int_to_ptr.vmem [resolvable:$true] %s15
      %21 = dma.hbm_to_vmem [thread:$0]  %s0, 256, %s16, [#allocation3], 128, 128, 8
    $region5: #{tpu_custom_call.1} parent=1 // pred_fallthru
      _
    // Predicated region
    $region6: #{tpu_custom_call.1} parent=1 // pred_check
      _
    $region7: #{tpu_custom_call.1} parent=1 // pred_check_branch
      %23 = sbr.rel (0) target = $region9
    $region8: #{tpu_custom_call.1} parent=1 // pred_region
      _
    $region9: #{tpu_custom_call.1} parent=1 // pred_fallthru
      _
    // Predicated region
    $region10: #{tpu_custom_call.1} parent=1 // pred_check
      _
    $region11: #{tpu_custom_call.1} parent=1 // pred_check_branch
      %25 = sbr.rel (0) target = $region13
    $region12: #{tpu_custom_call.1} parent=1 // pred_region
      _
    $region13: #{tpu_custom_call.1} parent=1 // pred_fallthru
      _
    // Predicated region
    $region14: #{tpu_custom_call.1} parent=1 // pred_check
      _
    $region15: #{tpu_custom_call.1} parent=1 // pred_check_branch
      %27 = sbr.rel (0) target = $region17
    $region16: #{tpu_custom_call.1} parent=1 // pred_region
      %28 = dma.done [#allocation3], 256
    $region17: #{tpu_custom_call.1} parent=1 // pred_fallthru
      _
    %v29 = vld [vmem:[#allocation2] sm:$0xff]
    %v31 = vcombine.high %v29, %v29
    %vm33 = vcmask 1043456
    %v34 = vsel %vm33, %v29, 0.0
    %v35 = vsel %vm33, %v31, 0.0
    %v36 = vadd.f32 %v34, %v35
    %37 = vadd.xlane.f32.xlu0 %v36
    %v38 = vpop.xlane.xlu0 %37
    %v39 = vmul.f32 %v38, 0.00390625
    %s40 = scalar_lea.vmem [#allocation2], 8
    %v41 = vld [vmem:[%s40] sm:$0xff]
    %v43 = vcombine.high %v41, %v41
    %v45 = vsel %vm33, %v41, 0.0
    %v46 = vsel %vm33, %v43, 0.0
    %v47 = vadd.f32 %v45, %v46
    %48 = vadd.xlane.f32.xlu0 %v47
    %v49 = vpop.xlane.xlu0 %48
    %v50 = vmul.f32 %v49, 0.00390625
    %vm51 = vcmask 7168
    %v52 = vsel %vm51, %v39, %v50
    %v53 = vld [vmem:[%s1] sm:$0xf]
    %v54 = vld [vmem:[%s2] sm:$0xf]
    %56 = vset.pattern.permute.xlu0 0
    %57 = vperm.xlu0 %56, %v54
    %v58 = vpop.permute.xlu0 %57
    %vm60 = vcmask 31744
    %v62 = vsel %vm60, %v53, 0
    %v65 = vsel %vm33, %v52, 0
    %67 = vmatprep.subr.mxu0 0.0
    %68 = vmatpush1.msra.mxu0 0.0
    %69 = vmatprep.subr.mxu0 0.0
    %70 = vmatpush1.msra.mxu0 0.0
    %71 = vmatprep.subr.mxu0 0.0
    %72 = vmatpush1.msra.mxu0 0.0
    %73 = vmatprep.subr.mxu0 0.0
    %74 = vmatpush1.msra.mxu0 0.0
    %75 = vmatprep.subr.mxu0 0.0
    %76 = vmatpush1.msra.mxu0 0.0
    %77 = vmatprep.subr.mxu0 0.0
    %78 = vmatpush1.msra.mxu0 0.0
    %79 = vmatprep.subr.mxu0 0.0
    %80 = vmatpush1.msra.mxu0 0.0
    %81 = vmatprep.subr.mxu0 0.0
    %82 = vmatpush1.msra.mxu0 0.0
    %83 = vmatprep.subr.mxu0 0.0
    %84 = vmatpush1.msra.mxu0 0.0
    %85 = vmatprep.subr.mxu0 0.0
    %86 = vmatpush1.msra.mxu0 0.0
    %87 = vmatprep.subr.mxu0 0.0
    %88 = vmatpush1.msra.mxu0 0.0
    %89 = vmatprep.subr.mxu0 0.0
    %90 = vmatpush1.msra.mxu0 0.0
    %91 = vmatprep.subr.mxu0 0.0
    %92 = vmatpush1.msra.mxu0 0.0
    %93 = vmatprep.subr.mxu0 0.0
    %94 = vmatpush1.msra.mxu0 0.0
    %95 = vmatprep.subr.mxu0 0.0
    %96 = vmatpush1.msra.mxu0 0.0
    %97 = vmatprep.subr.mxu0 0.0
    %98 = vmatpush1.msra.mxu0 %v65
    %99 = vmatprep.subr.mxu0 0.0
    %100 = vmatpush2.msra.mxu0 0.0
    %101 = vmatprep.subr.mxu0 0.0
    %102 = vmatpush2.msra.mxu0 0.0
    %103 = vmatprep.subr.mxu0 0.0
    %104 = vmatpush2.msra.mxu0 0.0
    %105 = vmatprep.subr.mxu0 0.0
    %106 = vmatpush2.msra.mxu0 0.0
    %107 = vmatprep.subr.mxu0 0.0
    %108 = vmatpush2.msra.mxu0 0.0
    %109 = vmatprep.subr.mxu0 0.0
    %110 = vmatpush2.msra.mxu0 0.0
    %111 = vmatprep.subr.mxu0 0.0
    %112 = vmatpush2.msra.mxu0 0.0
    %113 = vmatprep.subr.mxu0 0.0
    %114 = vmatpush2.msra.mxu0 0.0
    %115 = vmatprep.subr.mxu0 0.0
    %116 = vmatpush2.msra.mxu0 0.0
    %117 = vmatprep.subr.mxu0 0.0
    %118 = vmatpush2.msra.mxu0 0.0
    %119 = vmatprep.subr.mxu0 0.0
    %120 = vmatpush2.msra.mxu0 0.0
    %121 = vmatprep.subr.mxu0 0.0
    %122 = vmatpush2.msra.mxu0 0.0
    %123 = vmatprep.subr.mxu0 0.0
    %124 = vmatpush2.msra.mxu0 0.0
    %125 = vmatprep.subr.mxu0 0.0
    %126 = vmatpush2.msra.mxu0 0.0
    %127 = vmatprep.subr.mxu0 0.0
    %128 = vmatpush2.msra.mxu0 0.0
    %129 = vmatprep.subr.mxu0 0.0
    %130 = vmatpush2.msra.mxu0 0.0
    %131 = vmatprep.mubr.f32.mxu0 0.0
    %132 = vmatmul.mubr.f32.gmra.mxu0 %v62
    %v133 = vpop.f32.mrf.mxu0
    %v134 = vadd.f32 %v58, %v133
    %v135 = vpop.f32.mrf.mxu0
    %136 = vdwg.mxu0
    %v137 = vxor.u32 %v134, 2147483648
    %v138 = vmul.f32 %v137, 1.442695
    %v139 = vpow.pop %v138
    %v140 = vadd.f32 %v139, 1.0
    %v141 = vrcp.pop %v140
    %v142 = vmul.f32 1.0, %v141
    %144 = vset.pattern.permute.xlu0 0
    %145 = vperm.xlu0 %144, %v142
    %v146 = vpop.permute.xlu0 %145
    %v148 = vunpack.c.l.s4 839922192
    %v149 = vunpack.c.0.s8 %v148
    %v150 = vlaneseq
    %v151 = vshrl.u32 %v150, 7
    %v152 = vsub.s32 %v149, %v151
    %v153 = vrot.slane %v146, %v152
    %v155 = vmul.f32 %v29, %v153
    %156 = vst [vmem:[#allocation5] sm:$0xff] %v155
    %v157 = vld [vmem:[%s40] sm:$0xff]
    %158 = vset.pattern.permute.xlu0 1
    %159 = vperm.xlu0 %158, %v142
    %v160 = vpop.permute.xlu0 %159
    %v162 = vunpack.c.l.s4 839922192
    %v163 = vunpack.c.0.s8 %v162
    %v164 = vlaneseq
    %v165 = vshrl.u32 %v164, 7
    %v166 = vsub.s32 %v163, %v165
    %v167 = vrot.slane %v160, %v166
    %v169 = vmul.f32 %v157, %v167
    %s170 = scalar_lea.vmem [#allocation5], 8
    %171 = vst [vmem:[%s170] sm:$0xff] %v169
    // Predicated region
    $region18: #{tpu_custom_call.1} parent=1 // pred_check
      _
    $region19: #{tpu_custom_call.1} parent=1 // pred_check_branch
      %173 = sbr.rel (0) target = $region21
    $region20: #{tpu_custom_call.1} parent=1 // pred_region
      %s175 = ssub.s32 256, 256
      %176 = vsyncadd [#allocation4], %s175
      %s177 = sshll.u32 [#allocation5], 4
      %s178 = int_to_ptr.vmem [resolvable:$true] %s177
      %183 = dma.vmem_to_hbm [thread:$0]  %s178, 256, %s3, [#allocation4], 128, 128, 8
    $region21: #{tpu_custom_call.1} parent=1 // pred_fallthru
      _
    // Predicated region
    $region22: #{tpu_custom_call.1} parent=1 // pred_check
      _
    $region23: #{tpu_custom_call.1} parent=1 // pred_check_branch
      %185 = sbr.rel (0) target = $region25
    $region24: #{tpu_custom_call.1} parent=1 // pred_region
      %186 = dma.done [#allocation4], 256
    $region25: #{tpu_custom_call.1} parent=1 // pred_fallthru
      _
    %187 = vsyncpa [#allocation3], 1
    %188 = vsyncpa [#allocation4], 1

</llo_original>
